<compile_context>
chip_gen: v7x
topology: tpu7x:2x2x1
jax: 0.10.0
libtpu: 0.0.40
codegen_flags: <defaults>
</compile_context>

<pallas_src>
import functools

import jax
import jax.numpy as jnp
from jax.experimental import pallas as pl
from jax.experimental.pallas import tpu as pltpu

LANES = 128              # lane width (fast axis)
MAX_BLOCK_ROWS = 8192    # 8192 x 128 f32 = 4 MiB per input block
MIN_STEPS_PER_SPLIT = 4  # only split across TensorCores if each gets >= 4 steps


def _sublane_align(dtype) -> int:
    # (8,128) native tiles for 32-bit; packed dtypes need 16/32 sublanes.
    itemsize = jnp.dtype(dtype).itemsize
    return {4: 8, 2: 16, 1: 32}.get(itemsize, 8)


def _num_tensorcores() -> int:
    """Best-effort TensorCore count (2 on v7x megacore, 1 on v5e/v6e)."""
    try:
        info = pltpu.get_tpu_info()
    except Exception:
        return 1
    for attr in ("num_cores", "core_count", "num_tensorcores", "tensorcore_count"):
        v = getattr(info, attr, None)
        if isinstance(v, int) and v > 0:
            return v
    return 1


def _round_up(x: int, m: int) -> int:
    return ((x + m - 1) // m) * m


def _sse_kernel(o_ref, t_ref, out_ref, acc_ref, *, rows_total, block_rows, steps):
    """Accumulate sum of squared differences for one (block_rows, 128) tile."""
    s = pl.program_id(0)
    i = pl.program_id(1)

    @pl.when(i == 0)
    def _():
        acc_ref[...] = jnp.zeros_like(acc_ref)

    d = o_ref[...].astype(jnp.float32) - t_ref[...].astype(jnp.float32)
    sq = d * d

    # Global block index.  It may point past the last real block (virtual
    # trailing blocks of the last split) — the index_map clamps the DMA and
    # the mask below zeroes any rows this step does not really own.
    gb = s * steps + i
    start_row = gb * block_rows
    full_block = start_row + block_rows <= rows_total

    @pl.when(full_block)
    def _():
        # Fold onto the (8, 128) vector accumulator: pure VPU adds, no
        # cross-lane work on the per-step critical path.
        acc_ref[...] += sq.reshape(-1, 8, LANES).sum(axis=0)

    @pl.when(jnp.logical_not(full_block))
    def _():
        # Ragged / duplicated final block: mask rows beyond the real extent.
        row_ids = jax.lax.broadcasted_iota(jnp.int32, sq.shape, 0) + start_row
        masked = jnp.where(row_ids < rows_total, sq, 0.0)
        acc_ref[...] += masked.reshape(-1, 8, LANES).sum(axis=0)

    @pl.when(i == pl.num_programs(1) - 1)
    def _():
        # One XLU cross-lane/sublane reduce + scalar SMEM write per split.
        out_ref[0, 0] = jnp.sum(acc_ref[...])


def l2_loss(outputs, targets):
    """Mean squared error between outputs and targets (scalar float32)."""
    assert outputs.shape == targets.shape, "outputs/targets must match in shape"
    n_true = outputs.size
    if n_true == 0:
        # TODO(synk): torch MSE on empty tensors yields NaN; we return 0.0.
        return jnp.float32(0.0)

    rows = n_true // LANES   # full 128-lane rows
    rem = n_true % LANES     # sub-row remainder handled in the wrapper

    align = max(_sublane_align(outputs.dtype), _sublane_align(targets.dtype))

    if rows < align:
        # Too small to be worth a kernel launch: let XLA fuse the reduction.
        d = (outputs.astype(jnp.float32).reshape(-1)
             - targets.astype(jnp.float32).reshape(-1))
        return (jnp.sum(d * d) / jnp.float32(n_true)).astype(jnp.float32)

    n_kernel = rows * LANES
    if rem == 0:
        # Pure reshape (no slice, no copy): the kernel streams the full inputs.
        o2d = outputs.reshape(rows, LANES)
        t2d = targets.reshape(rows, LANES)
    else:
        # Rare ragged case (size not a multiple of 128): the prefix slice may
        # materialize a copy; only the <128-element tail goes to the jnp path.
        o2d = outputs.reshape(-1)[:n_kernel].reshape(rows, LANES)
        t2d = targets.reshape(-1)[:n_kernel].reshape(rows, LANES)

    # Block / grid geometry: large (up to 4 MiB f32 per input) sublane-aligned
    # blocks; all rows are covered in-kernel (ragged final block is masked).
    block_rows = min(_round_up(MAX_BLOCK_ROWS, align), (rows // align) * align)
    num_blocks = pl.cdiv(rows, block_rows)

    num_splits = 1
    if _num_tensorcores() >= 2 and num_blocks >= 2 * MIN_STEPS_PER_SPLIT:
        num_splits = 2
    steps = pl.cdiv(num_blocks, num_splits)

    def in_map(s, i):
        # Clamp virtual trailing blocks onto the final real block; the kernel's
        # row mask zeroes their contribution (no double counting).
        return (jnp.minimum(s * steps + i, num_blocks - 1), 0)

    kernel = functools.partial(
        _sse_kernel, rows_total=rows, block_rows=block_rows, steps=steps)

    itemsize_both = (jnp.dtype(outputs.dtype).itemsize
                     + jnp.dtype(targets.dtype).itemsize)
    # 2 pipeline buffers per input, both inputs, plus slack for accumulator /
    # compiler scratch.  Safe on all generations (64 MiB physical on v7x).
    needed = 2 * block_rows * LANES * itemsize_both
    vmem_limit = int(min(48 * 2**20, max(32 * 2**20, needed + 8 * 2**20)))

    partials = pl.pallas_call(
        kernel,
        out_shape=jax.ShapeDtypeStruct((num_splits, 1), jnp.float32),
        grid_spec=pltpu.PrefetchScalarGridSpec(
            num_scalar_prefetch=0,
            grid=(num_splits, steps),
            in_specs=[
                pl.BlockSpec((block_rows, LANES), in_map),
                pl.BlockSpec((block_rows, LANES), in_map),
            ],
            out_specs=pl.BlockSpec(
                (1, 1), lambda s, i: (s, 0), memory_space=pltpu.SMEM),
            scratch_shapes=[pltpu.VMEM((8, LANES), jnp.float32)],
        ),
        compiler_params=pltpu.CompilerParams(
            dimension_semantics=("parallel", "arbitrary"),
            vmem_limit_bytes=vmem_limit,
        ),
        cost_estimate=pl.CostEstimate(
            flops=3 * n_kernel,
            bytes_accessed=n_kernel * itemsize_both + 4 * num_splits,
            transcendentals=0,
        ),
    )(o2d, t2d)

    sse = jnp.sum(partials)

    # Sub-128-element remainder: tiny fused jnp reduction.
    if rem:
        dt = (outputs.reshape(-1)[n_kernel:].astype(jnp.float32)
              - targets.reshape(-1)[n_kernel:].astype(jnp.float32))
        sse = sse + jnp.sum(dt * dt)

    # Mean reduction (matches the conventional L2 / MSE loss).
    return (sse / jnp.float32(n_true)).astype(jnp.float32)


if __name__ == "__main__":
    key = jax.random.PRNGKey(0)
    k1, k2, k3, k4 = jax.random.split(key, 4)

    # Small NCHW-like shapes: batch=2, channels=4, spatial=16x16 (128-aligned).
    outputs = jax.random.normal(k1, (2, 4, 16, 16), dtype=jnp.float32)
    targets = jax.random.normal(k2, (2, 4, 16, 16), dtype=jnp.float32)
    loss = l2_loss(outputs, targets)
    jax.block_until_ready(loss)
    ref = jnp.mean((outputs - targets) ** 2)
    assert jnp.allclose(loss, ref, rtol=1e-5, atol=1e-6), (loss, ref)

    # Ragged shape (size not a multiple of 128): exercises masked final block
    # plus the sub-row jnp tail.
    o2 = jax.random.normal(k3, (3, 5, 7, 11), dtype=jnp.float32)
    t2 = jax.random.normal(k4, (3, 5, 7, 11), dtype=jnp.float32)
    loss2 = l2_loss(o2, t2)
    jax.block_until_ready(loss2)
    ref2 = jnp.mean((o2 - t2) ** 2)
    assert jnp.allclose(loss2, ref2, rtol=1e-5, atol=1e-6), (loss2, ref2)

    print("KERNEL_OK")
</pallas_src>

<mosaic_0001>
module attributes {stable_mosaic.version = 11 : i64} {
  func.func @_sse_kernel(%arg0: i32, %arg1: i32, %arg2: memref<16x128xf32, #tpu.memory_space<vmem>>, %arg3: memref<16x128xf32, #tpu.memory_space<vmem>>, %arg4: memref<1x1xf32, #tpu.memory_space<smem>>, %arg5: memref<8x128xf32, #tpu.memory_space<vmem>>) attributes {dimension_semantics = [#tpu.dimension_semantics<parallel>, #tpu.dimension_semantics<arbitrary>], iteration_bounds = array<i64: 1, 1>, scalar_prefetch = 0 : i64, scratch_operands = 1 : i64, tpu.core_type = #tpu.core_type<tc>, window_params = [{transform_indices = @transform_0, window_bounds = array<i64: 16, 128>}, {transform_indices = @transform_1, window_bounds = array<i64: 16, 128>}, {transform_indices = @transform_2, window_bounds = array<i64: 1, 1>}]} {
    %c0_i32 = arith.constant 0 : i32
    %0 = arith.cmpi eq, %arg1, %c0_i32 : i32
    %1 = arith.extui %0 : i1 to i32
    %c0_i32_0 = arith.constant 0 : i32
    %2 = arith.cmpi ne, %1, %c0_i32_0 : i32
    scf.if %2 {
      %cst = arith.constant 0.000000e+00 : f32
      %20 = vector.broadcast %cst : f32 to vector<8x128xf32>
      %c0_10 = arith.constant 0 : index
      %c0_11 = arith.constant 0 : index
      %21 = vector.load %arg5[%c0_10, %c0_11] : memref<8x128xf32, #tpu.memory_space<vmem>>, vector<8x128xf32>
      tpu.vector_store %arg5[%c0_10, %c0_11], %20 {strides = array<i32>} : memref<8x128xf32, #tpu.memory_space<vmem>>, vector<8x128xf32>,
    } else {
    }
    %c0 = arith.constant 0 : index
    %c0_1 = arith.constant 0 : index
    %3 = vector.load %arg2[%c0, %c0_1] : memref<16x128xf32, #tpu.memory_space<vmem>>, vector<16x128xf32>
    %c0_2 = arith.constant 0 : index
    %c0_3 = arith.constant 0 : index
    %4 = vector.load %arg3[%c0_2, %c0_3] : memref<16x128xf32, #tpu.memory_space<vmem>>, vector<16x128xf32>
    %5 = arith.subf %3, %4 : vector<16x128xf32>
    %6 = arith.mulf %5, %5 : vector<16x128xf32>
    %c1_i32 = arith.constant 1 : i32
    %7 = arith.muli %arg0, %c1_i32 : i32
    %8 = arith.addi %7, %arg1 : i32
    %c16_i32 = arith.constant 16 : i32
    %9 = arith.muli %8, %c16_i32 : i32
    %c16_i32_4 = arith.constant 16 : i32
    %10 = arith.addi %9, %c16_i32_4 : i32
    %c16_i32_5 = arith.constant 16 : i32
    %11 = arith.cmpi sle, %10, %c16_i32_5 : i32
    %12 = arith.extui %11 : i1 to i32
    %c0_i32_6 = arith.constant 0 : i32
    %13 = arith.cmpi ne, %12, %c0_i32_6 : i32
    scf.if %13 {
      %c0_10 = arith.constant 0 : index
      %c0_11 = arith.constant 0 : index
      %20 = vector.load %arg5[%c0_10, %c0_11] : memref<8x128xf32, #tpu.memory_space<vmem>>, vector<8x128xf32>
      %21 = vector.shape_cast %6 : vector<16x128xf32> to vector<2x8x128xf32>
      %cst = arith.constant dense<0.000000e+00> : vector<8x128xf32>
      %22 = vector.multi_reduction <add>, %21, %cst [0] : vector<2x8x128xf32> to vector<8x128xf32>
      %23 = arith.addf %20, %22 : vector<8x128xf32>
      %c0_12 = arith.constant 0 : index
      %c0_13 = arith.constant 0 : index
      %24 = vector.load %arg5[%c0_12, %c0_13] : memref<8x128xf32, #tpu.memory_space<vmem>>, vector<8x128xf32>
      tpu.vector_store %arg5[%c0_12, %c0_13], %23 {strides = array<i32>} : memref<8x128xf32, #tpu.memory_space<vmem>>, vector<8x128xf32>,
    } else {
    }
    %true = arith.constant true
    %14 = arith.xori %11, %true : i1
    %15 = arith.extui %14 : i1 to i32
    %c0_i32_7 = arith.constant 0 : i32
    %16 = arith.cmpi ne, %15, %c0_i32_7 : i32
    scf.if %16 {
      %20 = tpu.iota {dimensions = array<i32: 0>} : vector<16x128xi32>
      %21 = vector.broadcast %9 : i32 to vector<16x128xi32>
      %22 = arith.addi %20, %21 : vector<16x128xi32>
      %c16_i32_10 = arith.constant 16 : i32
      %23 = vector.broadcast %c16_i32_10 : i32 to vector<16x128xi32>
      %24 = arith.cmpi slt, %22, %23 : vector<16x128xi32>
      %cst = arith.constant 0.000000e+00 : f32
      %25 = vector.broadcast %cst : f32 to vector<16x128xf32>
      %26 = arith.select %24, %6, %25 : vector<16x128xi1>, vector<16x128xf32>
      %c0_11 = arith.constant 0 : index
      %c0_12 = arith.constant 0 : index
      %27 = vector.load %arg5[%c0_11, %c0_12] : memref<8x128xf32, #tpu.memory_space<vmem>>, vector<8x128xf32>
      %28 = vector.shape_cast %26 : vector<16x128xf32> to vector<2x8x128xf32>
      %cst_13 = arith.constant dense<0.000000e+00> : vector<8x128xf32>
      %29 = vector.multi_reduction <add>, %28, %cst_13 [0] : vector<2x8x128xf32> to vector<8x128xf32>
      %30 = arith.addf %27, %29 : vector<8x128xf32>
      %c0_14 = arith.constant 0 : index
      %c0_15 = arith.constant 0 : index
      %31 = vector.load %arg5[%c0_14, %c0_15] : memref<8x128xf32, #tpu.memory_space<vmem>>, vector<8x128xf32>
      tpu.vector_store %arg5[%c0_14, %c0_15], %30 {strides = array<i32>} : memref<8x128xf32, #tpu.memory_space<vmem>>, vector<8x128xf32>,
    } else {
    }
    %c0_i32_8 = arith.constant 0 : i32
    %17 = arith.cmpi eq, %arg1, %c0_i32_8 : i32
    %18 = arith.extui %17 : i1 to i32
    %c0_i32_9 = arith.constant 0 : i32
    %19 = arith.cmpi ne, %18, %c0_i32_9 : i32
    scf.if %19 {
      %c0_10 = arith.constant 0 : index
      %c0_11 = arith.constant 0 : index
      %20 = vector.load %arg5[%c0_10, %c0_11] : memref<8x128xf32, #tpu.memory_space<vmem>>, vector<8x128xf32>
      %21 = vector.shape_cast %20 : vector<8x128xf32> to vector<1x8x128xf32>
      %cst = arith.constant dense<0.000000e+00> : vector<1xf32>
      %22 = vector.multi_reduction <add>, %21, %cst [1, 2] : vector<1x8x128xf32> to vector<1xf32>
      %23 = vector.shape_cast %22 : vector<1xf32> to vector<1x1x1xf32>
      %24 = vector.extract %23[0, 0, 0] : f32 from vector<1x1x1xf32>
      %c0_12 = arith.constant 0 : index
      %c0_13 = arith.constant 0 : index
      %25 = memref.load %arg4[%c0_12, %c0_13] : memref<1x1xf32, #tpu.memory_space<smem>>
      memref.store %24, %arg4[%c0_12, %c0_13] : memref<1x1xf32, #tpu.memory_space<smem>>
    } else {
    }
    return
  }
  func.func @transform_0(%arg0: i32, %arg1: i32) -> (i32, i32) {
    %c1_i32 = arith.constant 1 : i32
    %0 = arith.muli %arg0, %c1_i32 : i32
    %1 = arith.addi %0, %arg1 : i32
    %c0_i32 = arith.constant 0 : i32
    %2 = arith.minsi %1, %c0_i32 : i32
    %c0_i32_0 = arith.constant 0 : i32
    %c0_i32_1 = arith.constant 0 : i32
    return %2, %c0_i32_0 : i32, i32
  }
  func.func @transform_1(%arg0: i32, %arg1: i32) -> (i32, i32) {
    %c1_i32 = arith.constant 1 : i32
    %0 = arith.muli %arg0, %c1_i32 : i32
    %1 = arith.addi %0, %arg1 : i32
    %c0_i32 = arith.constant 0 : i32
    %2 = arith.minsi %1, %c0_i32 : i32
    %c0_i32_0 = arith.constant 0 : i32
    %c0_i32_1 = arith.constant 0 : i32
    return %2, %c0_i32_0 : i32, i32
  }
  func.func @transform_2(%arg0: i32, %arg1: i32) -> (i32, i32) {
    %c0_i32 = arith.constant 0 : i32
    %c0_i32_0 = arith.constant 0 : i32
    return %arg0, %c0_i32 : i32, i32
  }
}

</mosaic_0001>

<llo_original>
// kernel: tpu_custom_call.1
$region0: #{tpu_custom_call.1}
  #allocation0 [shape = 'u32[]', space=smem, size = 0x4, offset = 0x4, fixed_abs, tag = 'smem constant byte address 0x4 - core index']
  #allocation1 [shape = 'u32[144,128]{1,0:T(1,128)}', space=vmem, size = 0x12000, scoped, tag = 'internal scratch']
  #allocation2 [shape = 'f32[8,128]{1,0:T(8,128)}', space=vmem, size = 0x1000, scoped, tag = 'scratch operand']
  %s0 = inlined_call_operand.hbm [shape: f32[16,128], index: 0, kind: input, shape index: {}]
  %s1 = inlined_call_operand.hbm [shape: f32[16,128], index: 1, kind: input, shape index: {}]
  %s2 = inlined_call_operand.hbm [shape: f32[1,1], index: 2, kind: output, shape index: {}]
  %s3 = sld [smem:[#allocation0]]
  $region42: #{tpu_custom_call.1} parent=0
    _
  %s5 = ssub.s32 1, %s3
  %s6 = scalar_select 0, %s5, %s3
  $region1: #{tpu_custom_call.1} parent=0
    #allocation3 [shape = 'u8[8192]{0}', space=vmem, size = 0x2000, scoped, tag = 'input window, operand 0, single buffered']
    #allocation4 [shape = 's32[1]{0}', space=sflag, size = 0x4, scoped, tag = 'scoped memory for tpu_custom_call.1']
    #allocation5 [shape = 's32[1]{0}', space=sflag, size = 0x4, scoped, tag = 'scoped memory for tpu_custom_call.1']
    #allocation6 [shape = 'u8[8192]{0}', space=vmem, size = 0x2000, scoped, tag = 'input window, operand 1, single buffered']
    #allocation7 [shape = 's32[1]{0}', space=sflag, size = 0x4, scoped, tag = 'scoped memory for tpu_custom_call.1']
    #allocation8 [shape = 'u8[512]{0}', space=smem, size = 0x200, scoped, tag = 'output window, operand 0, single buffered']
    %7 = vsyncpa [#allocation4], 0
    %8 = vsyncpa [#allocation7], 0
    %9 = vsyncpa [#allocation5], 0
    // Predicated region
    $region2: #{tpu_custom_call.1} parent=1 // pred_check
      _
    $region3: #{tpu_custom_call.1} parent=1 // pred_check_branch
      %11 = sbr.rel (0) target = $region5
    $region4: #{tpu_custom_call.1} parent=1 // pred_region
      %s12 = sadd.s32 0, 0
      %p13 = scmp.lt.s32.totalorder %s12, 0
      %s14 = scalar_select %p13, %s12, 0
      %s15 = smul.u32 2, %s14
      %s17 = ssub.s32 256, 256
      %18 = vsyncadd [#allocation4], %s17
      %s19 = smul.addr %s15, 128
      %s20 = scalar_lea.hbm %s0, %s19
      %s21 = sshll.u32 [#allocation3], 4
      %s22 = int_to_ptr.vmem [resolvable:$true] %s21
      %27 = dma.hbm_to_vmem [thread:$0]  %s20, 256, %s22, [#allocation4], 128, 128, 8
    $region5: #{tpu_custom_call.1} parent=1 // pred_fallthru
      _
    // Predicated region
    $region6: #{tpu_custom_call.1} parent=1 // pred_check
      _
    $region7: #{tpu_custom_call.1} parent=1 // pred_check_branch
      %29 = sbr.rel (0) target = $region9
    $region8: #{tpu_custom_call.1} parent=1 // pred_region
      %s30 = sadd.s32 0, 0
      %p31 = scmp.lt.s32.totalorder %s30, 0
      %s32 = scalar_select %p31, %s30, 0
      %s33 = smul.u32 2, %s32
      %s35 = ssub.s32 256, 256
      %36 = vsyncadd [#allocation7], %s35
      %s37 = smul.addr %s33, 128
      %s38 = scalar_lea.hbm %s1, %s37
      %s39 = sshll.u32 [#allocation6], 4
      %s40 = int_to_ptr.vmem [resolvable:$true] %s39
      %45 = dma.hbm_to_vmem [thread:$0]  %s38, 256, %s40, [#allocation7], 128, 128, 8
    $region9: #{tpu_custom_call.1} parent=1 // pred_fallthru
      _
    // Predicated region
    $region10: #{tpu_custom_call.1} parent=1 // pred_check
      _
    $region11: #{tpu_custom_call.1} parent=1 // pred_check_branch
      %47 = sbr.rel (0) target = $region13
    $region12: #{tpu_custom_call.1} parent=1 // pred_region
      %48 = dma.done [#allocation4], 256
    $region13: #{tpu_custom_call.1} parent=1 // pred_fallthru
      _
    // Predicated region
    $region14: #{tpu_custom_call.1} parent=1 // pred_check
      _
    $region15: #{tpu_custom_call.1} parent=1 // pred_check_branch
      %50 = sbr.rel (0) target = $region17
    $region16: #{tpu_custom_call.1} parent=1 // pred_region
      %51 = dma.done [#allocation7], 256
    $region17: #{tpu_custom_call.1} parent=1 // pred_fallthru
      _
    %s52 = sadd.s32 0, 0
    %p53 = scmp.lt.s32.totalorder %s52, 0
    %s54 = scalar_select %p53, %s52, 0
    %s55 = smul.u32 2, %s54
    %s56 = sadd.s32 0, 0
    %p57 = scmp.lt.s32.totalorder %s56, 0
    %s58 = scalar_select %p57, %s56, 0
    %s59 = smul.u32 2, %s58
    %p60 = scmp.eq.s32.totalorder 0, 0
    // Predicated region
    $region18: #{tpu_custom_call.1} parent=1 // pred_check
      %p61 = pneg %p60
    $region19: #{tpu_custom_call.1} parent=1 // pred_check_branch
      %63 = sbr.rel (%p61) target = $region21
    $region20: #{tpu_custom_call.1} parent=1 // pred_region
      %64 = vst [vmem:[#allocation2] sm:$0xff] 0.0
    $region21: #{tpu_custom_call.1} parent=1 // pred_fallthru
      _
    %v65 = vld [vmem:[#allocation3] sm:$0xff]
    %v66 = vld [vmem:[#allocation3 + $0x8] sm:$0xff]
    %v67 = vld [vmem:[#allocation6] sm:$0xff]
    %v68 = vld [vmem:[#allocation6 + $0x8] sm:$0xff]
    %v69 = vsub.f32 %v65, %v67
    %v70 = vsub.f32 %v66, %v68
    %v71 = vmul.f32 %v69, %v69
    %v72 = vmul.f32 %v70, %v70
    %s73 = sadd.s32 0, 0
    %s74 = smul.u32 %s73, 16
    %s75 = sadd.s32 %s74, 16
    %p76 = scmp.le.s32.totalorder %s75, 16
    // Predicated region
    $region22: #{tpu_custom_call.1} parent=1 // pred_check
      %p77 = pneg %p76
    $region23: #{tpu_custom_call.1} parent=1 // pred_check_branch
      %79 = sbr.rel (%p77) target = $region25
    $region24: #{tpu_custom_call.1} parent=1 // pred_region
      %v80 = vld [vmem:[#allocation2] sm:$0xff]
      %v81 = vadd.f32 %v71, %v72
      %v82 = vadd.f32 %v80, %v81
      %83 = vst [vmem:[#allocation2] sm:$0xff] %v82
    $region25: #{tpu_custom_call.1} parent=1 // pred_fallthru
      _
    %p84 = scmp.gt.s32.totalorder %s75, 16
    // Predicated region
    $region26: #{tpu_custom_call.1} parent=1 // pred_check
      %p85 = pneg %p84
    $region27: #{tpu_custom_call.1} parent=1 // pred_check_branch
      %87 = sbr.rel (%p85) target = $region29
    $region28: #{tpu_custom_call.1} parent=1 // pred_region
      %v88 = vlaneseq
      %v89 = vshrl.u32 %v88, 7
      %v90 = vadd.s32 %v89, 8
      %v91 = vstv %s74
      %v92 = vadd.s32 %v89, %v91
      %v93 = vadd.s32 %v90, %v91
      %vm94 = vcmp.lt.s32.totalorder %v92, 16
      %vm95 = vcmp.lt.s32.totalorder %v93, 16
      %v96 = vsel %vm94, %v71, 0.0
      %v97 = vsel %vm95, %v72, 0.0
      %v98 = vld [vmem:[#allocation2] sm:$0xff]
      %v99 = vadd.f32 %v96, %v97
      %v100 = vadd.f32 %v98, %v99
      %101 = vst [vmem:[#allocation2] sm:$0xff] %v100
    $region29: #{tpu_custom_call.1} parent=1 // pred_fallthru
      _
    // Predicated region
    $region30: #{tpu_custom_call.1} parent=1 // pred_check
      %p102 = pneg %p60
    $region31: #{tpu_custom_call.1} parent=1 // pred_check_branch
      %104 = sbr.rel (%p102) target = $region33
    $region32: #{tpu_custom_call.1} parent=1 // pred_region
      %v105 = vld [vmem:[#allocation2] sm:$0xff]
      %106 = vadd.xlane.f32.xlu0 %v105
      %v107 = vpop.xlane.xlu0 %106
      %v108 = vrot.slane %v107, 4
      %v109 = vadd.f32 %v107, %v108
      %v110 = vrot.slane %v109, 2
      %v111 = vadd.f32 %v109, %v110
      %v112 = vrot.slane %v111, 1
      %v113 = vadd.f32 %v111, %v112
      %s114 = vtos %v113
      %s115 = scalar_lea.smem [#allocation8], 0
      %116 = sst [smem:[%s115]] %s114
    $region33: #{tpu_custom_call.1} parent=1 // pred_fallthru
      _
    // Predicated region
    $region34: #{tpu_custom_call.1} parent=1 // pred_check
      _
    $region35: #{tpu_custom_call.1} parent=1 // pred_check_branch
      %118 = sbr.rel (0) target = $region37
    $region36: #{tpu_custom_call.1} parent=1 // pred_region
      %s120 = ssub.s32 16, 16
      %121 = vsyncadd [#allocation5], %s120
      %124 = dma.smem_to_hbm [#allocation8], 16, %s2, [#allocation5]
    $region37: #{tpu_custom_call.1} parent=1 // pred_fallthru
      _
    // Predicated region
    $region38: #{tpu_custom_call.1} parent=1 // pred_check
      _
    $region39: #{tpu_custom_call.1} parent=1 // pred_check_branch
      %126 = sbr.rel (0) target = $region41
    $region40: #{tpu_custom_call.1} parent=1 // pred_region
      %127 = dma.done [#allocation5], 16
    $region41: #{tpu_custom_call.1} parent=1 // pred_fallthru
      _
    %128 = sfence
    %129 = vsyncpa [#allocation4], 1
    %130 = vsyncpa [#allocation7], 1
    %131 = vsyncpa [#allocation5], 1

</llo_original>
